<compile_context>
chip_gen: v5e
topology: v5e:2x2
jax: 0.10.0
libtpu: 0.0.40
codegen_flags: <defaults>
</compile_context>

<pallas_src>
import functools

import jax
import jax.numpy as jnp
from jax import lax
from jax.experimental import pallas as pl
from jax.experimental.pallas import tpu as pltpu

LANES = 128
SUBLANES = 8
TILE_R_MAX = 8192            # rows per grid step (4 MiB f32 per input block)
CHUNK_R = 1024               # rows per in-kernel reduction sub-chunk
VMEM_LIMIT_BYTES = 48 * 1024 * 1024


def _num_parallel_splits():
    """One accumulator block / grid split per TensorCore (best effort)."""
    try:
        kind = jax.devices()[0].device_kind.lower()
    except Exception:
        return 2
    single_tc = ("v5e", "v5 lite", "v5lite", "v6e", "v6 lite", "v6lite")
    if any(s in kind for s in single_tc):
        return 1
    return 2                 # harmless on single-TC chips, needed on v7x


def _focal_loss_kernel(pt_ref, tgt_ref, out_ref, *, gamma, alpha, n_valid,
                       chunk_r, n_chunks, binary_targets):
    tile_r = pt_ref.shape[0]
    c = pl.program_id(0)                       # parallel split (TensorCore)
    j = pl.program_id(1)                       # sequential row-tile sweep
    t = c * pl.num_programs(1) + j             # logical tile index
    base = t * (tile_r * LANES)                # flat index of tile's 1st elem

    @pl.when(j == 0)
    def _():
        out_ref[...] = jnp.zeros_like(out_ref)

    one = jnp.float32(1.0)
    a = jnp.float32(alpha)

    def chunk_loss(r0):
        p = pt_ref[pl.ds(r0, chunk_r), :].astype(jnp.float32)
        tg = tgt_ref[pl.ds(r0, chunk_r), :].astype(jnp.float32)
        if binary_targets:
            # Single-log form; only valid for strictly 0/1 labels.
            pos = tg > jnp.float32(0.5)
            p_t = jnp.where(pos, p, one - p)
            w = jnp.where(pos, -a, -(one - a))
            return w * (one - p_t) ** gamma * jnp.log(p_t)
        # Reference (soft-label-capable) form:
        #   -a*(1-p)^g * t * log(p) - (1-a)*p^g * (1-t) * log(1-p)
        return (-a * (one - p) ** gamma * tg * jnp.log(p)
                - (one - a) * p ** gamma * (one - tg) * jnp.log(one - p))

    def accumulate(apply_mask):
        if apply_mask:
            # Within-chunk flat element index (same for every chunk).
            idx = (lax.broadcasted_iota(jnp.int32, (chunk_r, LANES), 0) * LANES
                   + lax.broadcasted_iota(jnp.int32, (chunk_r, LANES), 1))
        part = jnp.zeros((SUBLANES, LANES), jnp.float32)
        for ci in range(n_chunks):
            r0 = ci * chunk_r                  # static (Python int) start
            loss = chunk_loss(r0)
            if apply_mask:
                limit = n_valid - base - r0 * LANES       # scalar
                # Select (not multiply) so NaN/Inf on padded/garbage elements
                # is discarded cleanly.
                loss = jnp.where(idx < limit, loss, jnp.float32(0.0))
            part = part + loss.reshape(chunk_r // SUBLANES, SUBLANES,
                                       LANES).sum(axis=0)
        out_ref[...] += part                   # resident (8,128) accumulator

    # Only boundary tiles (and the fully-masked clamped re-read step, if any)
    # need the padding mask; interior tiles take the cheap path.
    is_boundary = base + tile_r * LANES > n_valid

    @pl.when(is_boundary)
    def _():
        accumulate(True)

    @pl.when(jnp.logical_not(is_boundary))
    def _():
        accumulate(False)


def bce_focal_loss(pt, target, gamma=2, alpha=0.25,
                   reduction='elementwise_mean', binary_targets=False):
    """Pallas TPU implementation of BCEFocalLoss.forward.

    binary_targets=True selects a cheaper single-log formulation that is only
    valid when `target` holds strictly 0/1 labels; the default general path
    matches the PyTorch module exactly (including soft labels).
    """
    assert pt.shape == target.shape
    n = int(pt.size)
    assert 0 < n < 2 ** 31 - TILE_R_MAX * LANES, "int32 flat indexing in-kernel"

    if reduction not in ('elementwise_mean', 'sum'):
        # TODO(synk): reduction='none' (elementwise output) not implemented;
        # the module's default path is 'elementwise_mean'.
        raise NotImplementedError(reduction)

    # Integer gamma -> integer_pow on the VPU.  Load-bearing: a non-integer
    # float gamma lowers ** to exp(g*log(x)) and adds 2 EUP pushes per term.
    gamma_f = float(gamma)
    gamma = int(gamma_f) if gamma_f.is_integer() else gamma_f

    # Native dtypes all the way into the kernel (no f32 upcast pass over HBM).
    pt_flat = jnp.ravel(pt)
    tgt_flat = jnp.ravel(target)

    # Pad only the <128-element tail (no-op when n % 128 == 0 — common case).
    pad = (-n) % LANES
    if pad:
        pt_flat = jnp.concatenate(
            [pt_flat, jnp.full((pad,), 0.5, pt_flat.dtype)])
        tgt_flat = jnp.concatenate(
            [tgt_flat, jnp.zeros((pad,), tgt_flat.dtype)])
    rows = (n + pad) // LANES

    # Row alignment: 8 for 32-bit dtypes, 16 for 16-bit, 32 for 8-bit/bool.
    itemsize = min(jnp.dtype(pt_flat.dtype).itemsize,
                   jnp.dtype(tgt_flat.dtype).itemsize)
    row_align = max(SUBLANES, 32 // max(1, int(itemsize)))

    if rows >= TILE_R_MAX:
        tile_r = TILE_R_MAX
    else:
        tile_r = -(-rows // row_align) * row_align
    if tile_r % CHUNK_R == 0 and tile_r > CHUNK_R:
        chunk_r = CHUNK_R
    else:
        chunk_r = tile_r
    n_chunks = tile_r // chunk_r

    tiles_total = -(-rows // tile_r)
    num_splits = max(1, min(_num_parallel_splits(), tiles_total))
    steps_per_split = -(-tiles_total // num_splits)

    pt2d = pt_flat.reshape(rows, LANES)        # free row-major reshape
    tgt2d = tgt_flat.reshape(rows, LANES)

    def in_map(c, j):
        # Clamp: an overhanging step re-reads the last tile; its contribution
        # is zeroed in-kernel because its logical base is >= n.
        return (jnp.minimum(c * steps_per_split + j, tiles_total - 1), 0)

    in_spec = pl.BlockSpec((tile_r, LANES), in_map)
    out_spec = pl.BlockSpec((SUBLANES, LANES), lambda c, j: (c, 0))

    kernel = functools.partial(
        _focal_loss_kernel, gamma=gamma, alpha=float(alpha), n_valid=n,
        chunk_r=chunk_r, n_chunks=n_chunks, binary_targets=bool(binary_targets))

    partials = pl.pallas_call(
        kernel,
        out_shape=jax.ShapeDtypeStruct((num_splits * SUBLANES, LANES),
                                       jnp.float32),
        grid_spec=pl.GridSpec(
            grid=(num_splits, steps_per_split),
            in_specs=[in_spec, in_spec],
            out_specs=out_spec,
        ),
        compiler_params=pltpu.CompilerParams(
            dimension_semantics=("parallel", "arbitrary"),
            vmem_limit_bytes=VMEM_LIMIT_BYTES),
    )(pt2d, tgt2d)

    # Tiny final cross-lane reduce (num_splits*8*128 f32) in plain JAX.
    total = jnp.sum(partials)
    if reduction == 'elementwise_mean':
        total = total / jnp.float32(n)
    return total


def _reference(pt, target, gamma=2, alpha=0.25, reduction='elementwise_mean'):
    pt = pt.astype(jnp.float32)
    target = target.astype(jnp.float32)
    loss = (-alpha * (1 - pt) ** gamma * target * jnp.log(pt)
            - (1 - alpha) * pt ** gamma * (1 - target) * jnp.log(1 - pt))
    return jnp.mean(loss) if reduction == 'elementwise_mean' else jnp.sum(loss)


if __name__ == "__main__":
    key = jax.random.PRNGKey(0)
    k1, k2, k3, k4, k5, k6 = jax.random.split(key, 6)

    # pt: predicted probabilities in (0, 1); target: binary labels. NCHW shape.
    shape = (2, 4, 16, 16)
    pt = jax.random.uniform(k1, shape, jnp.float32, minval=1e-3, maxval=1 - 1e-3)
    target = (jax.random.uniform(k2, shape, jnp.float32) > 0.5).astype(jnp.float32)

    # Mean reduction, general (soft-label-capable) path.
    loss = jax.block_until_ready(bce_focal_loss(pt, target, gamma=2, alpha=0.25))
    ref = _reference(pt, target)
    assert jnp.allclose(loss, ref, rtol=1e-5, atol=1e-6), (loss, ref)

    # Sum reduction.
    loss_s = jax.block_until_ready(bce_focal_loss(pt, target, reduction='sum'))
    ref_s = _reference(pt, target, reduction='sum')
    assert jnp.allclose(loss_s, ref_s, rtol=1e-5, atol=1e-5), (loss_s, ref_s)

    # Cheaper single-log path (labels here are strictly 0/1).
    loss_b = jax.block_until_ready(bce_focal_loss(pt, target, binary_targets=True))
    assert jnp.allclose(loss_b, ref, rtol=1e-5, atol=1e-6), (loss_b, ref)

    # Ragged size (n % 128 != 0) with integer labels: exercises the tail pad,
    # the boundary masking path and native non-float label dtypes.
    shape2 = (3, 11, 31)
    pt2 = jax.random.uniform(k3, shape2, jnp.float32, minval=1e-3, maxval=1 - 1e-3)
    tgt2 = (jax.random.uniform(k4, shape2, jnp.float32) > 0.5).astype(jnp.int32)
    loss2 = jax.block_until_ready(bce_focal_loss(pt2, tgt2))
    ref2 = _reference(pt2, tgt2)
    assert jnp.allclose(loss2, ref2, rtol=1e-5, atol=1e-6), (loss2, ref2)

    # Multi-tile case: exercises the 8192-row tiles, chunked reduction,
    # cross-step accumulation, the clamped index_map and the partial edge tile.
    shape3 = (2, 5, 1024, 128)
    pt3 = jax.random.uniform(k5, shape3, jnp.float32, minval=1e-3, maxval=1 - 1e-3)
    tgt3 = (jax.random.uniform(k6, shape3, jnp.float32) > 0.5).astype(jnp.float32)
    loss3 = jax.block_until_ready(bce_focal_loss(pt3, tgt3))
    ref3 = _reference(pt3, tgt3)
    assert jnp.allclose(loss3, ref3, rtol=1e-4, atol=1e-6), (loss3, ref3)

    print("KERNEL_OK")
</pallas_src>

<mosaic_0001>
module attributes {stable_mosaic.version = 11 : i64} {
  func.func @_focal_loss_kernel(%arg0: i32, %arg1: i32, %arg2: memref<16x128xf32, #tpu.memory_space<vmem>>, %arg3: memref<16x128xf32, #tpu.memory_space<vmem>>, %arg4: memref<8x128xf32, #tpu.memory_space<vmem>>) attributes {dimension_semantics = [#tpu.dimension_semantics<parallel>, #tpu.dimension_semantics<arbitrary>], iteration_bounds = array<i64: 1, 1>, scalar_prefetch = 0 : i64, scratch_operands = 0 : i64, tpu.core_type = #tpu.core_type<tc>, window_params = [{transform_indices = @transform_0, window_bounds = array<i64: 16, 128>}, {transform_indices = @transform_1, window_bounds = array<i64: 16, 128>}, {transform_indices = @transform_2, window_bounds = array<i64: 8, 128>}]} {
    %c1_i32 = arith.constant 1 : i32
    %0 = arith.muli %arg0, %c1_i32 : i32
    %1 = arith.addi %0, %arg1 : i32
    %c2048_i32 = arith.constant 2048 : i32
    %2 = arith.muli %1, %c2048_i32 : i32
    %c0_i32 = arith.constant 0 : i32
    %3 = arith.cmpi eq, %arg1, %c0_i32 : i32
    %4 = arith.extui %3 : i1 to i32
    %c0_i32_0 = arith.constant 0 : i32
    %5 = arith.cmpi ne, %4, %c0_i32_0 : i32
    scf.if %5 {
      %cst_8 = arith.constant 0.000000e+00 : f32
      %13 = vector.broadcast %cst_8 : f32 to vector<8x128xf32>
      %c0 = arith.constant 0 : index
      %c0_9 = arith.constant 0 : index
      %14 = vector.load %arg4[%c0, %c0_9] : memref<8x128xf32, #tpu.memory_space<vmem>>, vector<8x128xf32>
      tpu.vector_store %arg4[%c0, %c0_9], %13 {strides = array<i32>} : memref<8x128xf32, #tpu.memory_space<vmem>>, vector<8x128xf32>,
    } else {
    }
    %c2048_i32_1 = arith.constant 2048 : i32
    %6 = arith.addi %2, %c2048_i32_1 : i32
    %c2048_i32_2 = arith.constant 2048 : i32
    %7 = arith.cmpi sgt, %6, %c2048_i32_2 : i32
    %8 = arith.extui %7 : i1 to i32
    %cst = arith.constant 2.500000e-01 : f32
    %cst_3 = arith.constant 1.000000e+00 : f32
    %c0_i32_4 = arith.constant 0 : i32
    %9 = arith.cmpi ne, %8, %c0_i32_4 : i32
    scf.if %9 {
      %13 = tpu.iota {dimensions = array<i32: 0>} : vector<16x128xi32>
      %c128_i32 = arith.constant 128 : i32
      %14 = vector.broadcast %c128_i32 : i32 to vector<16x128xi32>
      %15 = arith.muli %13, %14 : vector<16x128xi32>
      %16 = tpu.iota {dimensions = array<i32: 1>} : vector<16x128xi32>
      %17 = arith.addi %15, %16 : vector<16x128xi32>
      %cst_8 = arith.constant 0.000000e+00 : f32
      %18 = vector.broadcast %cst_8 : f32 to vector<8x128xf32>
      %c0 = arith.constant 0 : index
      %c0_9 = arith.constant 0 : index
      %19 = vector.load %arg2[%c0, %c0_9] : memref<16x128xf32, #tpu.memory_space<vmem>>, vector<16x128xf32>
      %c0_10 = arith.constant 0 : index
      %c0_11 = arith.constant 0 : index
      %20 = vector.load %arg3[%c0_10, %c0_11] : memref<16x128xf32, #tpu.memory_space<vmem>>, vector<16x128xf32>
      %cst_12 = arith.constant 0.000000e+00 : f32
      %21 = arith.subf %cst_12, %cst : f32
      %22 = vector.broadcast %cst_3 : f32 to vector<16x128xf32>
      %23 = arith.subf %22, %19 : vector<16x128xf32>
      %24 = arith.mulf %23, %23 : vector<16x128xf32>
      %25 = vector.broadcast %21 : f32 to vector<16x128xf32>
      %26 = arith.mulf %25, %24 : vector<16x128xf32>
      %27 = arith.mulf %26, %20 : vector<16x128xf32>
      %28 = math.log %19 : vector<16x128xf32>
      %29 = arith.mulf %27, %28 : vector<16x128xf32>
      %30 = arith.subf %cst_3, %cst : f32
      %31 = arith.mulf %19, %19 : vector<16x128xf32>
      %32 = vector.broadcast %30 : f32 to vector<16x128xf32>
      %33 = arith.mulf %32, %31 : vector<16x128xf32>
      %34 = vector.broadcast %cst_3 : f32 to vector<16x128xf32>
      %35 = arith.subf %34, %20 : vector<16x128xf32>
      %36 = arith.mulf %33, %35 : vector<16x128xf32>
      %37 = vector.broadcast %cst_3 : f32 to vector<16x128xf32>
      %38 = arith.subf %37, %19 : vector<16x128xf32>
      %39 = math.log %38 : vector<16x128xf32>
      %40 = arith.mulf %36, %39 : vector<16x128xf32>
      %41 = arith.subf %29, %40 : vector<16x128xf32>
      %c2048_i32_13 = arith.constant 2048 : i32
      %42 = arith.subi %c2048_i32_13, %2 : i32
      %c0_i32_14 = arith.constant 0 : i32
      %43 = arith.subi %42, %c0_i32_14 : i32
      %44 = vector.broadcast %43 : i32 to vector<16x128xi32>
      %45 = arith.cmpi slt, %17, %44 : vector<16x128xi32>
      %cst_15 = arith.constant 0.000000e+00 : f32
      %46 = vector.broadcast %cst_15 : f32 to vector<16x128xf32>
      %47 = arith.select %45, %41, %46 : vector<16x128xi1>, vector<16x128xf32>
      %48 = vector.shape_cast %47 : vector<16x128xf32> to vector<2x8x128xf32>
      %cst_16 = arith.constant dense<0.000000e+00> : vector<8x128xf32>
      %49 = vector.multi_reduction <add>, %48, %cst_16 [0] : vector<2x8x128xf32> to vector<8x128xf32>
      %50 = arith.addf %18, %49 : vector<8x128xf32>
      %c0_17 = arith.constant 0 : index
      %c0_18 = arith.constant 0 : index
      %51 = vector.load %arg4[%c0_17, %c0_18] : memref<8x128xf32, #tpu.memory_space<vmem>>, vector<8x128xf32>
      %52 = arith.addf %51, %50 : vector<8x128xf32>
      %c0_19 = arith.constant 0 : index
      %c0_20 = arith.constant 0 : index
      %53 = vector.load %arg4[%c0_19, %c0_20] : memref<8x128xf32, #tpu.memory_space<vmem>>, vector<8x128xf32>
      tpu.vector_store %arg4[%c0_19, %c0_20], %52 {strides = array<i32>} : memref<8x128xf32, #tpu.memory_space<vmem>>, vector<8x128xf32>,
    } else {
    }
    %true = arith.constant true
    %10 = arith.xori %7, %true : i1
    %11 = arith.extui %10 : i1 to i32
    %cst_5 = arith.constant 2.500000e-01 : f32
    %cst_6 = arith.constant 1.000000e+00 : f32
    %c0_i32_7 = arith.constant 0 : i32
    %12 = arith.cmpi ne, %11, %c0_i32_7 : i32
    scf.if %12 {
      %cst_8 = arith.constant 0.000000e+00 : f32
      %13 = vector.broadcast %cst_8 : f32 to vector<8x128xf32>
      %c0 = arith.constant 0 : index
      %c0_9 = arith.constant 0 : index
      %14 = vector.load %arg2[%c0, %c0_9] : memref<16x128xf32, #tpu.memory_space<vmem>>, vector<16x128xf32>
      %c0_10 = arith.constant 0 : index
      %c0_11 = arith.constant 0 : index
      %15 = vector.load %arg3[%c0_10, %c0_11] : memref<16x128xf32, #tpu.memory_space<vmem>>, vector<16x128xf32>
      %cst_12 = arith.constant 0.000000e+00 : f32
      %16 = arith.subf %cst_12, %cst_5 : f32
      %17 = vector.broadcast %cst_6 : f32 to vector<16x128xf32>
      %18 = arith.subf %17, %14 : vector<16x128xf32>
      %19 = arith.mulf %18, %18 : vector<16x128xf32>
      %20 = vector.broadcast %16 : f32 to vector<16x128xf32>
      %21 = arith.mulf %20, %19 : vector<16x128xf32>
      %22 = arith.mulf %21, %15 : vector<16x128xf32>
      %23 = math.log %14 : vector<16x128xf32>
      %24 = arith.mulf %22, %23 : vector<16x128xf32>
      %25 = arith.subf %cst_6, %cst_5 : f32
      %26 = arith.mulf %14, %14 : vector<16x128xf32>
      %27 = vector.broadcast %25 : f32 to vector<16x128xf32>
      %28 = arith.mulf %27, %26 : vector<16x128xf32>
      %29 = vector.broadcast %cst_6 : f32 to vector<16x128xf32>
      %30 = arith.subf %29, %15 : vector<16x128xf32>
      %31 = arith.mulf %28, %30 : vector<16x128xf32>
      %32 = vector.broadcast %cst_6 : f32 to vector<16x128xf32>
      %33 = arith.subf %32, %14 : vector<16x128xf32>
      %34 = math.log %33 : vector<16x128xf32>
      %35 = arith.mulf %31, %34 : vector<16x128xf32>
      %36 = arith.subf %24, %35 : vector<16x128xf32>
      %37 = vector.shape_cast %36 : vector<16x128xf32> to vector<2x8x128xf32>
      %cst_13 = arith.constant dense<0.000000e+00> : vector<8x128xf32>
      %38 = vector.multi_reduction <add>, %37, %cst_13 [0] : vector<2x8x128xf32> to vector<8x128xf32>
      %39 = arith.addf %13, %38 : vector<8x128xf32>
      %c0_14 = arith.constant 0 : index
      %c0_15 = arith.constant 0 : index
      %40 = vector.load %arg4[%c0_14, %c0_15] : memref<8x128xf32, #tpu.memory_space<vmem>>, vector<8x128xf32>
      %41 = arith.addf %40, %39 : vector<8x128xf32>
      %c0_16 = arith.constant 0 : index
      %c0_17 = arith.constant 0 : index
      %42 = vector.load %arg4[%c0_16, %c0_17] : memref<8x128xf32, #tpu.memory_space<vmem>>, vector<8x128xf32>
      tpu.vector_store %arg4[%c0_16, %c0_17], %41 {strides = array<i32>} : memref<8x128xf32, #tpu.memory_space<vmem>>, vector<8x128xf32>,
    } else {
    }
    return
  }
  func.func @transform_0(%arg0: i32, %arg1: i32) -> (i32, i32) {
    %c1_i32 = arith.constant 1 : i32
    %0 = arith.muli %arg0, %c1_i32 : i32
    %1 = arith.addi %0, %arg1 : i32
    %c0_i32 = arith.constant 0 : i32
    %2 = arith.minsi %1, %c0_i32 : i32
    %c0_i32_0 = arith.constant 0 : i32
    %c0_i32_1 = arith.constant 0 : i32
    return %2, %c0_i32_0 : i32, i32
  }
  func.func @transform_1(%arg0: i32, %arg1: i32) -> (i32, i32) {
    %c1_i32 = arith.constant 1 : i32
    %0 = arith.muli %arg0, %c1_i32 : i32
    %1 = arith.addi %0, %arg1 : i32
    %c0_i32 = arith.constant 0 : i32
    %2 = arith.minsi %1, %c0_i32 : i32
    %c0_i32_0 = arith.constant 0 : i32
    %c0_i32_1 = arith.constant 0 : i32
    return %2, %c0_i32_0 : i32, i32
  }
  func.func @transform_2(%arg0: i32, %arg1: i32) -> (i32, i32) {
    %c0_i32 = arith.constant 0 : i32
    %c0_i32_0 = arith.constant 0 : i32
    return %arg0, %c0_i32 : i32, i32
  }
}

</mosaic_0001>

<llo_original>
// kernel: tpu_custom_call.1
$region0: #{tpu_custom_call.1}
  #allocation0 [shape = 'u32[]', space=smem, size = 0x4, offset = 0x4, fixed_abs, tag = 'smem constant byte address 0x4 - core index']
  #allocation1 [shape = 'u32[72,128]{1,0:T(1,128)}', space=vmem, size = 0x9000, scoped, tag = 'internal scratch']
  %s0 = inlined_call_operand.hbm [shape: f32[16,128], index: 0, kind: input, shape index: {}]
  %s1 = inlined_call_operand.hbm [shape: f32[16,128], index: 1, kind: input, shape index: {}]
  %s2 = inlined_call_operand.hbm [shape: f32[8,128], index: 2, kind: output, shape index: {}]
  %s3 = sld [smem:[#allocation0]]
  $region38: #{tpu_custom_call.1} parent=0
    _
  %s5 = ssub.s32 1, %s3
  %s6 = scalar_select 0, %s5, %s3
  $region1: #{tpu_custom_call.1} parent=0
    #allocation2 [shape = 'u8[8192]{0}', space=vmem, size = 0x2000, scoped, tag = 'input window, operand 0, single buffered']
    #allocation3 [shape = 's32[1]{0}', space=sflag, size = 0x4, scoped, tag = 'scoped memory for tpu_custom_call.1']
    #allocation4 [shape = 's32[1]{0}', space=sflag, size = 0x4, scoped, tag = 'scoped memory for tpu_custom_call.1']
    #allocation5 [shape = 'u8[8192]{0}', space=vmem, size = 0x2000, scoped, tag = 'input window, operand 1, single buffered']
    #allocation6 [shape = 's32[1]{0}', space=sflag, size = 0x4, scoped, tag = 'scoped memory for tpu_custom_call.1']
    #allocation7 [shape = 'u8[4096]{0}', space=vmem, size = 0x1000, scoped, tag = 'output window, operand 0, single buffered']
    %7 = vsyncpa [#allocation3], 0
    %8 = vsyncpa [#allocation6], 0
    %9 = vsyncpa [#allocation4], 0
    // Predicated region
    $region2: #{tpu_custom_call.1} parent=1 // pred_check
      _
    $region3: #{tpu_custom_call.1} parent=1 // pred_check_branch
      %11 = sbr.rel (0) target = $region5
    $region4: #{tpu_custom_call.1} parent=1 // pred_region
      %s12 = sadd.s32 0, 0
      %p13 = scmp.lt.s32.totalorder %s12, 0
      %s14 = scalar_select %p13, %s12, 0
      %s15 = smul.u32 2, %s14
      %17 = vsyncadd [#allocation3], 0
      %s18 = smul.addr %s15, 8
      %s19 = scalar_lea.hbm %s0, %s18
      %s20 = sshll.u32 %s19, 4
      %s21 = int_to_ptr.hbm [resolvable:$true] %s20
      %s22 = sshll.u32 [#allocation2], 4
      %s23 = int_to_ptr.vmem [resolvable:$true] %s22
      %28 = dma.hbm_to_vmem [thread:$0]  %s21, 256, %s23, [#allocation3], 128, 128, 8
    $region5: #{tpu_custom_call.1} parent=1 // pred_fallthru
      _
    // Predicated region
    $region6: #{tpu_custom_call.1} parent=1 // pred_check
      _
    $region7: #{tpu_custom_call.1} parent=1 // pred_check_branch
      %30 = sbr.rel (0) target = $region9
    $region8: #{tpu_custom_call.1} parent=1 // pred_region
      %s31 = sadd.s32 0, 0
      %p32 = scmp.lt.s32.totalorder %s31, 0
      %s33 = scalar_select %p32, %s31, 0
      %s34 = smul.u32 2, %s33
      %36 = vsyncadd [#allocation6], 0
      %s37 = smul.addr %s34, 8
      %s38 = scalar_lea.hbm %s1, %s37
      %s39 = sshll.u32 %s38, 4
      %s40 = int_to_ptr.hbm [resolvable:$true] %s39
      %s41 = sshll.u32 [#allocation5], 4
      %s42 = int_to_ptr.vmem [resolvable:$true] %s41
      %47 = dma.hbm_to_vmem [thread:$0]  %s40, 256, %s42, [#allocation6], 128, 128, 8
    $region9: #{tpu_custom_call.1} parent=1 // pred_fallthru
      _
    // Predicated region
    $region10: #{tpu_custom_call.1} parent=1 // pred_check
      _
    $region11: #{tpu_custom_call.1} parent=1 // pred_check_branch
      %49 = sbr.rel (0) target = $region13
    $region12: #{tpu_custom_call.1} parent=1 // pred_region
      %51 = dma.done [#allocation3], 256
    $region13: #{tpu_custom_call.1} parent=1 // pred_fallthru
      _
    // Predicated region
    $region14: #{tpu_custom_call.1} parent=1 // pred_check
      _
    $region15: #{tpu_custom_call.1} parent=1 // pred_check_branch
      %53 = sbr.rel (0) target = $region17
    $region16: #{tpu_custom_call.1} parent=1 // pred_region
      %55 = dma.done [#allocation6], 256
    $region17: #{tpu_custom_call.1} parent=1 // pred_fallthru
      _
    %s56 = sadd.s32 0, 0
    %p57 = scmp.lt.s32.totalorder %s56, 0
    %s58 = scalar_select %p57, %s56, 0
    %s59 = smul.u32 2, %s58
    %s60 = sadd.s32 0, 0
    %p61 = scmp.lt.s32.totalorder %s60, 0
    %s62 = scalar_select %p61, %s60, 0
    %s63 = smul.u32 2, %s62
    %s64 = sadd.s32 0, 0
    %s65 = smul.u32 %s64, 2048
    %p66 = scmp.eq.s32.totalorder 0, 0
    // Predicated region
    $region18: #{tpu_custom_call.1} parent=1 // pred_check
      %p67 = pneg %p66
    $region19: #{tpu_custom_call.1} parent=1 // pred_check_branch
      %69 = sbr.rel (%p67) target = $region21
    $region20: #{tpu_custom_call.1} parent=1 // pred_region
      %70 = vst [vmem:[#allocation7] sm:$0xff] 0.0
    $region21: #{tpu_custom_call.1} parent=1 // pred_fallthru
      _
    %s71 = sadd.s32 %s65, 2048
    %p72 = scmp.gt.s32.totalorder %s71, 2048
    // Predicated region
    $region22: #{tpu_custom_call.1} parent=1 // pred_check
      %p73 = pneg %p72
    $region23: #{tpu_custom_call.1} parent=1 // pred_check_branch
      %75 = sbr.rel (%p73) target = $region25
    $region24: #{tpu_custom_call.1} parent=1 // pred_region
      %v76 = vlaneseq
      %v77 = vshrl.u32 %v76, 7
      %v78 = vadd.s32 %v77, 8
      %v79 = vmul.u32 %v77, 128
      %v80 = vmul.u32 %v78, 128
      %v81 = vlaneseq
      %v82 = vand.u32 %v81, 127
      %v83 = vadd.s32 %v79, %v82
      %v84 = vadd.s32 %v80, %v82
      %v85 = vld [vmem:[#allocation2] sm:$0xff]
      %v86 = vld [vmem:[#allocation2 + $0x8] sm:$0xff]
      %v87 = vld [vmem:[#allocation5] sm:$0xff]
      %v88 = vld [vmem:[#allocation5 + $0x8] sm:$0xff]
      %v89 = vsub.f32 1.0, %v85
      %v90 = vsub.f32 1.0, %v86
      %v91 = vmul.f32 %v89, %v89
      %v92 = vmul.f32 %v90, %v90
      %v93 = vmul.f32 %v91, -0.25
      %v94 = vmul.f32 %v92, -0.25
      %v95 = vmul.f32 %v93, %v87
      %v96 = vmul.f32 %v94, %v88
      %v97 = vlog2.pop %v85
      %v98 = vmul.f32 %v97, 0.6931472
      %v99 = vlog2.pop %v86
      %v100 = vmul.f32 %v99, 0.6931472
      %v101 = vmul.f32 %v95, %v98
      %v102 = vmul.f32 %v96, %v100
      %v103 = vmul.f32 %v85, %v85
      %v104 = vmul.f32 %v86, %v86
      %v105 = vmul.f32 %v103, 0.75
      %v106 = vmul.f32 %v104, 0.75
      %v107 = vsub.f32 1.0, %v87
      %v108 = vsub.f32 1.0, %v88
      %v109 = vmul.f32 %v105, %v107
      %v110 = vmul.f32 %v106, %v108
      %v111 = vlog2.pop %v89
      %v112 = vmul.f32 %v111, 0.6931472
      %v113 = vlog2.pop %v90
      %v114 = vmul.f32 %v113, 0.6931472
      %v115 = vmul.f32 %v109, %v112
      %v116 = vmul.f32 %v110, %v114
      %v117 = vsub.f32 %v101, %v115
      %v118 = vsub.f32 %v102, %v116
      %s119 = ssub.s32 2048, %s65
      %v120 = vstv %s119
      %vm121 = vcmp.lt.s32.totalorder %v83, %v120
      %vm122 = vcmp.lt.s32.totalorder %v84, %v120
      %v123 = vsel %vm121, %v117, 0.0
      %v124 = vsel %vm122, %v118, 0.0
      %v125 = vadd.f32 %v123, %v124
      %v126 = vadd.f32 %v125, 0.0
      %v127 = vld [vmem:[#allocation7] sm:$0xff]
      %v128 = vadd.f32 %v127, %v126
      %129 = vst [vmem:[#allocation7] sm:$0xff] %v128
    $region25: #{tpu_custom_call.1} parent=1 // pred_fallthru
      _
    %p130 = pneg %p72
    // Predicated region
    $region26: #{tpu_custom_call.1} parent=1 // pred_check
      _
    $region27: #{tpu_custom_call.1} parent=1 // pred_check_branch
      %132 = sbr.rel (%p72) target = $region29
    $region28: #{tpu_custom_call.1} parent=1 // pred_region
      %v133 = vld [vmem:[#allocation2] sm:$0xff]
      %v134 = vld [vmem:[#allocation2 + $0x8] sm:$0xff]
      %v135 = vld [vmem:[#allocation5] sm:$0xff]
      %v136 = vld [vmem:[#allocation5 + $0x8] sm:$0xff]
      %v137 = vsub.f32 1.0, %v133
      %v138 = vsub.f32 1.0, %v134
      %v139 = vmul.f32 %v137, %v137
      %v140 = vmul.f32 %v138, %v138
      %v141 = vmul.f32 %v139, -0.25
      %v142 = vmul.f32 %v140, -0.25
      %v143 = vmul.f32 %v141, %v135
      %v144 = vmul.f32 %v142, %v136
      %v145 = vlog2.pop %v133
      %v146 = vmul.f32 %v145, 0.6931472
      %v147 = vlog2.pop %v134
      %v148 = vmul.f32 %v147, 0.6931472
      %v149 = vmul.f32 %v143, %v146
      %v150 = vmul.f32 %v144, %v148
      %v151 = vmul.f32 %v133, %v133
      %v152 = vmul.f32 %v134, %v134
      %v153 = vmul.f32 %v151, 0.75
      %v154 = vmul.f32 %v152, 0.75
      %v155 = vsub.f32 1.0, %v135
      %v156 = vsub.f32 1.0, %v136
      %v157 = vmul.f32 %v153, %v155
      %v158 = vmul.f32 %v154, %v156
      %v159 = vlog2.pop %v137
      %v160 = vmul.f32 %v159, 0.6931472
      %v161 = vlog2.pop %v138
      %v162 = vmul.f32 %v161, 0.6931472
      %v163 = vmul.f32 %v157, %v160
      %v164 = vmul.f32 %v158, %v162
      %v165 = vsub.f32 %v149, %v163
      %v166 = vsub.f32 %v150, %v164
      %v167 = vadd.f32 %v165, %v166
      %v168 = vadd.f32 %v167, 0.0
      %v169 = vld [vmem:[#allocation7] sm:$0xff]
      %v170 = vadd.f32 %v169, %v168
      %171 = vst [vmem:[#allocation7] sm:$0xff] %v170
    $region29: #{tpu_custom_call.1} parent=1 // pred_fallthru
      _
    // Predicated region
    $region30: #{tpu_custom_call.1} parent=1 // pred_check
      _
    $region31: #{tpu_custom_call.1} parent=1 // pred_check_branch
      %173 = sbr.rel (0) target = $region33
    $region32: #{tpu_custom_call.1} parent=1 // pred_region
      %175 = vsyncadd [#allocation4], 0
      %s177 = sshll.u32 [#allocation7], 4
      %s178 = int_to_ptr.vmem [resolvable:$true] %s177
      %s179 = sshll.u32 %s2, 4
      %s180 = int_to_ptr.hbm [resolvable:$true] %s179
      %182 = dma.vmem_to_hbm [thread:$0]  %s178, 128, %s180, [#allocation4]
    $region33: #{tpu_custom_call.1} parent=1 // pred_fallthru
      _
    // Predicated region
    $region34: #{tpu_custom_call.1} parent=1 // pred_check
      _
    $region35: #{tpu_custom_call.1} parent=1 // pred_check_branch
      %184 = sbr.rel (0) target = $region37
    $region36: #{tpu_custom_call.1} parent=1 // pred_region
      %186 = dma.done [#allocation4], 128
    $region37: #{tpu_custom_call.1} parent=1 // pred_fallthru
      _
    %187 = vsyncpa [#allocation3], 1
    %188 = vsyncpa [#allocation6], 1
    %189 = vsyncpa [#allocation4], 1

</llo_original>
